<compile_context>
chip_gen: v7x
topology: tpu7x:2x2x1
jax: 0.10.0
libtpu: 0.0.40
codegen_flags: <defaults>
</compile_context>

<pallas_src>
import jax
import jax.numpy as jnp
from jax.experimental import pallas as pl
from jax.experimental.pallas import tpu as pltpu


def maxpool2x2_kernel(x_ref, o_ref):
    # x_ref block: (2, 2, TH, TL) -- the four 2x2-window planes on the leading axes.
    # o_ref block: (TH, TL).
    # Pure VPU elementwise max over whole lane-dense vregs; no cross-lane/sublane work.
    o_ref[...] = jnp.maximum(jnp.maximum(x_ref[0, 0], x_ref[0, 1]),
                             jnp.maximum(x_ref[1, 0], x_ref[1, 1]))


def max_pooling(x, kernel_size=2, stride=2, padding=0):
    """MaxPool2d(kernel_size=2, stride=2, padding=0) on NCHW input via Pallas."""
    assert kernel_size == 2 and stride == 2 and padding == 0
    N, C, H, W = x.shape
    Ho, Wo = H // 2, W // 2
    if H % 2 or W % 2:                       # PyTorch floor mode: drop trailing row/col
        x = x[:, :, : 2 * Ho, : 2 * Wo]
    NC = N * C
    L = Wo * NC                              # merged, lane-dense trailing axis

    # Layout plumbing (free reshapes + one XLA transpose): put the 2x2 window elements
    # on the leading axes and (Wo, N*C) merged on the lane axis.
    xt = jnp.transpose(x.reshape(NC, Ho, 2, Wo, 2), (2, 4, 1, 3, 0)).reshape(2, 2, Ho, L)

    # --- Tile sizing: biggest blocks that keep 2x(in)+2x(out) comfortably in VMEM. ---
    itemsize = x.dtype.itemsize
    budget = 8 * 1024 * 1024                 # bytes per pipeline stage (in + out block)

    # Lane tile: keep the whole merged lane axis unless even an 8-row slab would blow
    # the budget; then split it in multiples of 128 lanes.
    max_lane_elems = budget // (5 * itemsize * 8)
    t_l = L if L <= max_lane_elems else max(128, (max_lane_elems // 128) * 128)

    bytes_per_row = 5 * t_l * itemsize       # 4 input window rows + 1 output row
    t_h = max(1, min(Ho, budget // max(bytes_per_row, 1)))
    # Prefer >=4 grid steps (feeds both v7x TensorCores) as long as blocks stay >=~2 MiB.
    quarter = -(-Ho // 4)
    if quarter * bytes_per_row >= (2 << 20):
        t_h = min(t_h, quarter)
    # Sublane block dim must be a multiple of 8 or the full extent.
    if t_h < Ho:
        t_h = min(Ho, max(8, (t_h // 8) * 8))

    grid = (pl.cdiv(Ho, t_h), pl.cdiv(L, t_l))

    out = pl.pallas_call(
        maxpool2x2_kernel,
        out_shape=jax.ShapeDtypeStruct((Ho, L), x.dtype),
        grid=grid,
        in_specs=[pl.BlockSpec((2, 2, t_h, t_l), lambda i, j: (0, 0, i, j))],
        out_specs=pl.BlockSpec((t_h, t_l), lambda i, j: (i, j)),
        compiler_params=pltpu.CompilerParams(
            dimension_semantics=("parallel", "parallel"),
            vmem_limit_bytes=32 * 1024 * 1024,
        ),
    )(xt)

    # Undo the layout plumbing: (Ho, Wo*NC) -> (N, C, Ho, Wo).
    return jnp.transpose(out.reshape(Ho, Wo, NC), (2, 0, 1)).reshape(N, C, Ho, Wo)


if __name__ == "__main__":
    key = jax.random.PRNGKey(0)
    x = jax.random.normal(key, (2, 4, 16, 16), dtype=jnp.float32)

    y = jax.block_until_ready(max_pooling(x))

    # Sanity check against a pure-JAX reference (reduce_window == MaxPool2d here).
    ref = jax.lax.reduce_window(
        x, -jnp.inf, jax.lax.max,
        window_dimensions=(1, 1, 2, 2), window_strides=(1, 1, 2, 2), padding="VALID")
    assert y.shape == (2, 4, 8, 8), y.shape
    assert jnp.allclose(y, ref), "mismatch vs reference max pool"

    # Odd spatial dims -> PyTorch floor mode (trailing row/col dropped).
    x2 = jax.random.normal(jax.random.PRNGKey(1), (1, 3, 7, 9), dtype=jnp.float32)
    y2 = jax.block_until_ready(max_pooling(x2))
    ref2 = jax.lax.reduce_window(
        x2[:, :, :6, :8], -jnp.inf, jax.lax.max,
        window_dimensions=(1, 1, 2, 2), window_strides=(1, 1, 2, 2), padding="VALID")
    assert y2.shape == (1, 3, 3, 4), y2.shape
    assert jnp.allclose(y2, ref2), "mismatch vs reference max pool (odd dims)"

    print("KERNEL_OK")
</pallas_src>

<mosaic_0001>
module attributes {stable_mosaic.version = 11 : i64} {
  func.func @maxpool2x2_kernel(%arg0: i32, %arg1: i32, %arg2: memref<2x2x8x64xf32, #tpu.memory_space<vmem>>, %arg3: memref<8x64xf32, #tpu.memory_space<vmem>>) attributes {dimension_semantics = [#tpu.dimension_semantics<parallel>, #tpu.dimension_semantics<parallel>], iteration_bounds = array<i64: 1, 1>, scalar_prefetch = 0 : i64, scratch_operands = 0 : i64, tpu.core_type = #tpu.core_type<tc>, window_params = [{transform_indices = @transform_0, window_bounds = array<i64: 2, 2, 8, 64>}, {transform_indices = @transform_1, window_bounds = array<i64: 8, 64>}]} {
    %c0 = arith.constant 0 : index
    %c0_0 = arith.constant 0 : index
    %c0_1 = arith.constant 0 : index
    %c0_2 = arith.constant 0 : index
    %0 = vector.load %arg2[%c0, %c0_0, %c0_1, %c0_2] : memref<2x2x8x64xf32, #tpu.memory_space<vmem>>, vector<1x1x8x64xf32>
    %1 = vector.shape_cast %0 : vector<1x1x8x64xf32> to vector<8x64xf32>
    %c0_3 = arith.constant 0 : index
    %c1 = arith.constant 1 : index
    %c0_4 = arith.constant 0 : index
    %c0_5 = arith.constant 0 : index
    %2 = vector.load %arg2[%c0_3, %c1, %c0_4, %c0_5] : memref<2x2x8x64xf32, #tpu.memory_space<vmem>>, vector<1x1x8x64xf32>
    %3 = vector.shape_cast %2 : vector<1x1x8x64xf32> to vector<8x64xf32>
    %4 = arith.maximumf %1, %3 : vector<8x64xf32>
    %c1_6 = arith.constant 1 : index
    %c0_7 = arith.constant 0 : index
    %c0_8 = arith.constant 0 : index
    %c0_9 = arith.constant 0 : index
    %5 = vector.load %arg2[%c1_6, %c0_7, %c0_8, %c0_9] : memref<2x2x8x64xf32, #tpu.memory_space<vmem>>, vector<1x1x8x64xf32>
    %6 = vector.shape_cast %5 : vector<1x1x8x64xf32> to vector<8x64xf32>
    %c1_10 = arith.constant 1 : index
    %c1_11 = arith.constant 1 : index
    %c0_12 = arith.constant 0 : index
    %c0_13 = arith.constant 0 : index
    %7 = vector.load %arg2[%c1_10, %c1_11, %c0_12, %c0_13] : memref<2x2x8x64xf32, #tpu.memory_space<vmem>>, vector<1x1x8x64xf32>
    %8 = vector.shape_cast %7 : vector<1x1x8x64xf32> to vector<8x64xf32>
    %9 = arith.maximumf %6, %8 : vector<8x64xf32>
    %10 = arith.maximumf %4, %9 : vector<8x64xf32>
    %c0_14 = arith.constant 0 : index
    %c0_15 = arith.constant 0 : index
    %11 = vector.load %arg3[%c0_14, %c0_15] : memref<8x64xf32, #tpu.memory_space<vmem>>, vector<8x64xf32>
    tpu.vector_store %arg3[%c0_14, %c0_15], %10 {strides = array<i32>} : memref<8x64xf32, #tpu.memory_space<vmem>>, vector<8x64xf32>,
    return
  }
  func.func @transform_0(%arg0: i32, %arg1: i32) -> (i32, i32, i32, i32) {
    %c0_i32 = arith.constant 0 : i32
    %c0_i32_0 = arith.constant 0 : i32
    %c0_i32_1 = arith.constant 0 : i32
    return %c0_i32, %c0_i32_0, %arg0, %arg1 : i32, i32, i32, i32
  }
  func.func @transform_1(%arg0: i32, %arg1: i32) -> (i32, i32) {
    %c0_i32 = arith.constant 0 : i32
    return %arg0, %arg1 : i32, i32
  }
}

</mosaic_0001>

<llo_original>
// kernel: tpu_custom_call.1
$region0: #{tpu_custom_call.1}
  #allocation0 [shape = 'u32[]', space=smem, size = 0x4, offset = 0x4, fixed_abs, tag = 'smem constant byte address 0x4 - core index']
  #allocation1 [shape = 'u32[144,128]{1,0:T(1,128)}', space=vmem, size = 0x12000, scoped, tag = 'internal scratch']
  %s0 = inlined_call_operand.hbm [shape: f32[2,2,8,64], index: 0, kind: input, shape index: {}]
  %s1 = inlined_call_operand.hbm [shape: f32[8,64], index: 1, kind: output, shape index: {}]
  %s2 = sld [smem:[#allocation0]]
  $region18: #{tpu_custom_call.1} parent=0
    _
  %s4 = ssub.s32 1, %s2
  %s5 = scalar_select 0, %s4, %s2
  $region1: #{tpu_custom_call.1} parent=0
    #allocation2 [shape = 'u8[16384]{0}', space=vmem, size = 0x4000, scoped, tag = 'input window, operand 0, single buffered']
    #allocation3 [shape = 's32[1]{0}', space=sflag, size = 0x4, scoped, tag = 'scoped memory for tpu_custom_call.1']
    #allocation4 [shape = 's32[1]{0}', space=sflag, size = 0x4, scoped, tag = 'scoped memory for tpu_custom_call.1']
    #allocation5 [shape = 'u8[4096]{0}', space=vmem, size = 0x1000, scoped, tag = 'output window, operand 0, single buffered']
    %6 = vsyncpa [#allocation3], 0
    %7 = vsyncpa [#allocation4], 0
    // Predicated region
    $region2: #{tpu_custom_call.1} parent=1 // pred_check
      _
    $region3: #{tpu_custom_call.1} parent=1 // pred_check_branch
      %9 = sbr.rel (0) target = $region5
    $region4: #{tpu_custom_call.1} parent=1 // pred_region
      %s11 = ssub.s32 512, 512
      %12 = vsyncadd [#allocation3], %s11
      %s13 = sshll.u32 [#allocation2], 4
      %s14 = int_to_ptr.vmem [resolvable:$true] %s13
      %19 = dma.hbm_to_vmem [thread:$0]  %s0, 512, %s14, [#allocation3], 128, 128, 8
    $region5: #{tpu_custom_call.1} parent=1 // pred_fallthru
      _
    // Predicated region
    $region6: #{tpu_custom_call.1} parent=1 // pred_check
      _
    $region7: #{tpu_custom_call.1} parent=1 // pred_check_branch
      %21 = sbr.rel (0) target = $region9
    $region8: #{tpu_custom_call.1} parent=1 // pred_region
      %22 = dma.done [#allocation3], 512
    $region9: #{tpu_custom_call.1} parent=1 // pred_fallthru
      _
    %v23 = vld [vmem:[#allocation2] sm:$0xff]
    %s24 = scalar_lea.vmem [#allocation2], 8
    %v25 = vld [vmem:[%s24] sm:$0xff]
    %v26 = vmax.f32 %v23, %v25
    %s27 = scalar_lea.vmem [#allocation2], 16
    %v28 = vld [vmem:[%s27] sm:$0xff]
    %s29 = scalar_lea.vmem [#allocation2], 24
    %v30 = vld [vmem:[%s29] sm:$0xff]
    %v31 = vmax.f32 %v28, %v30
    %v32 = vmax.f32 %v26, %v31
    %vm33 = vcmask 523264
    %34 = vst.msk [vmem:[#allocation5] sm:$0xff] %vm33, %v32
    // Predicated region
    $region10: #{tpu_custom_call.1} parent=1 // pred_check
      _
    $region11: #{tpu_custom_call.1} parent=1 // pred_check_branch
      %36 = sbr.rel (0) target = $region13
    $region12: #{tpu_custom_call.1} parent=1 // pred_region
      %s38 = ssub.s32 128, 128
      %39 = vsyncadd [#allocation4], %s38
      %s41 = sshll.u32 [#allocation5], 4
      %s42 = int_to_ptr.vmem [resolvable:$true] %s41
      %44 = dma.vmem_to_hbm [thread:$0]  %s42, 128, %s1, [#allocation4]
    $region13: #{tpu_custom_call.1} parent=1 // pred_fallthru
      _
    // Predicated region
    $region14: #{tpu_custom_call.1} parent=1 // pred_check
      _
    $region15: #{tpu_custom_call.1} parent=1 // pred_check_branch
      %46 = sbr.rel (0) target = $region17
    $region16: #{tpu_custom_call.1} parent=1 // pred_region
      %47 = dma.done [#allocation4], 128
    $region17: #{tpu_custom_call.1} parent=1 // pred_fallthru
      _
    %48 = vsyncpa [#allocation3], 1
    %49 = vsyncpa [#allocation4], 1

</llo_original>
